<compile_context>
chip_gen: v5e
topology: v5e:2x2
jax: 0.10.0
libtpu: 0.0.40
codegen_flags: <defaults>
</compile_context>

<pallas_src>
import functools

import jax
import jax.numpy as jnp
from jax.experimental import pallas as pl
from jax.experimental.pallas import tpu as pltpu


def actor_critic_kernel(x_ref, w1_ref, b1_ref, wh_ref, bh_ref, out_ref,
                        *, num_actions):
    # ---- affine1 + ReLU: bf16 MXU matmul, f32 accumulate, f32 elementwise ----
    h = jnp.dot(x_ref[...], w1_ref[...], preferred_element_type=jnp.float32)
    h = jnp.maximum(h + b1_ref[...], 0.0)                        # (TB, H) f32

    # ---- fused actor+value heads: one narrow (H, OUT) matmul ----
    z = jnp.dot(h.astype(wh_ref.dtype), wh_ref[...],
                preferred_element_type=jnp.float32)
    z = z + bh_ref[...]                                          # (TB, OUT) f32

    lane = jax.lax.broadcasted_iota(jnp.int32, z.shape, dimension=1)
    is_action = lane < num_actions                               # lanes 0..A-1
    is_value = lane == num_actions                               # lane A

    # ---- softmax over action lanes only (pad lanes -> -inf -> exp == 0) ----
    # Safe because num_actions >= 1 (asserted at fuse time), so denom >= 1.
    z_act = jnp.where(is_action, z, -jnp.inf)
    m = jnp.max(z_act, axis=-1, keepdims=True)
    e = jnp.exp(z_act - m)
    denom = jnp.sum(e, axis=-1, keepdims=True)
    probs = e / denom        # exact divide: rows sum to 1 within f32 rounding

    # ---- pack probs (lanes < A) + value (lane A) into one narrow slab ----
    out_ref[...] = jnp.where(is_value, z, probs)


def fuse_head_params(params, *, mxu_dtype=jnp.bfloat16):
    """One-time packing: concat Wa|Wv into a narrow (H, OUT) head weight.

    MXU operands (W1, fused head W) are stored in `mxu_dtype` (bf16 default);
    biases stay f32 since bias-add / softmax run in f32 on the VPU/EUP.
    """
    H, A = params["wa"].shape
    assert A >= 1, "softmax lane masking requires at least one action"
    out_lanes = max(8, -(-(A + 1) // 8) * 8)      # probs + value, >= 8 lanes
    wh = jnp.zeros((H, out_lanes), jnp.float32)
    wh = wh.at[:, :A].set(params["wa"]).at[:, A:A + 1].set(params["wv"])
    bh = jnp.zeros((1, out_lanes), jnp.float32)
    bh = bh.at[:, :A].set(params["ba"]).at[:, A:A + 1].set(params["bv"])
    return {
        "w1": params["w1"].astype(mxu_dtype),
        "b1": params["b1"].astype(jnp.float32),
        "wh": wh.astype(mxu_dtype),
        "bh": bh.astype(jnp.float32),
        "num_actions": A,
        "out_lanes": out_lanes,
    }


def actor_critic_forward(x, fused, *, batch_tile=4096):
    """x: (B, num_states). fused: output of fuse_head_params."""
    B, S = x.shape
    H = fused["w1"].shape[1]
    A = fused["num_actions"]
    OUT = fused["out_lanes"]

    # Batch tile: multiple of 8 sublanes, as large as possible (amortizes the
    # per-grid-step pipeline overhead), but capped at ~ceil(B/2) so there are
    # always >= 2 grid steps for megacore / v7x's two TensorCores.
    half8 = max(8, -(-(-(-B // 2)) // 8) * 8)     # round_up8(ceil(B/2))
    tb = max(8, min(batch_tile, half8))

    # No host-side pad: Pallas masks the ragged tail block. (All per-row math
    # is independent, so padded rows never affect real outputs.)
    grid = (pl.cdiv(B, tb),)

    # Production note: ideally the producer emits x already in the MXU dtype
    # (bf16) so this cast fuses away instead of being an extra pass over x.
    x = x.astype(fused["w1"].dtype)

    kernel = functools.partial(actor_critic_kernel, num_actions=A)

    out = pl.pallas_call(
        kernel,
        out_shape=jax.ShapeDtypeStruct((B, OUT), jnp.float32),
        grid=grid,
        in_specs=[
            pl.BlockSpec((tb, S), lambda i: (i, 0)),     # x: tiled over batch
            pl.BlockSpec((S, H), lambda i: (0, 0)),      # W1: VMEM-resident
            pl.BlockSpec((1, H), lambda i: (0, 0)),      # b1: VMEM-resident
            pl.BlockSpec((H, OUT), lambda i: (0, 0)),    # fused head W
            pl.BlockSpec((1, OUT), lambda i: (0, 0)),    # fused head b
        ],
        out_specs=pl.BlockSpec((tb, OUT), lambda i: (i, 0)),
        compiler_params=pltpu.CompilerParams(
            dimension_semantics=("parallel",)),
    )(x, fused["w1"], fused["b1"], fused["wh"], fused["bh"])

    probs = out[:, :A]
    values = out[:, A:A + 1]
    return probs, values


def init_params(key, num_states, hidden, num_actions):
    """Deterministic synthetic init (PyTorch-style uniform fan-in bound)."""
    ks = jax.random.split(key, 6)

    def lin(kw, kb, fan_in, fan_out):
        bound = 1.0 / jnp.sqrt(fan_in)
        w = jax.random.uniform(kw, (fan_in, fan_out), jnp.float32, -bound, bound)
        b = jax.random.uniform(kb, (1, fan_out), jnp.float32, -bound, bound)
        return w, b

    w1, b1 = lin(ks[0], ks[1], num_states, hidden)
    wa, ba = lin(ks[2], ks[3], hidden, num_actions)
    wv, bv = lin(ks[4], ks[5], hidden, 1)
    return {"w1": w1, "b1": b1, "wa": wa, "ba": ba, "wv": wv, "bv": bv}


def reference_forward(x, p):
    h = jnp.maximum(x @ p["w1"] + p["b1"], 0.0)
    logits = h @ p["wa"] + p["ba"]
    probs = jax.nn.softmax(logits, axis=-1)
    values = h @ p["wv"] + p["bv"]
    return probs, values


# TODO(synk): select_action (Categorical sampling, saved_actions bookkeeping)
# is host-side RL plumbing outside the nn.Module forward pass; not a kernel.

if __name__ == "__main__":
    key = jax.random.PRNGKey(0)
    k_x, k_p = jax.random.split(key)

    B = 16           # small batch -> 2 grid steps at tile 8 (exercises pipeline)
    NUM_STATES = 16  # feature vector size fed to affine1
    HIDDEN = 128
    NUM_ACTIONS = 6  # bomberman action set

    params = init_params(k_p, NUM_STATES, HIDDEN, NUM_ACTIONS)
    fused = fuse_head_params(params)          # bf16 MXU weights, f32 biases
    x = jax.random.normal(k_x, (B, NUM_STATES), jnp.float32)

    probs, values = actor_critic_forward(x, fused)
    jax.block_until_ready((probs, values))

    ref_probs, ref_values = reference_forward(x, params)   # pure-f32 reference
    assert probs.shape == (B, NUM_ACTIONS) and values.shape == (B, 1)
    # bf16 MXU inputs (f32 accumulate) -> tolerances sized for bf16 rounding.
    assert jnp.allclose(probs, ref_probs, atol=2e-2, rtol=2e-2)
    assert jnp.allclose(values, ref_values, atol=5e-2, rtol=5e-2)
    # Exact softmax divide -> rows sum to 1 within f32 rounding.
    assert jnp.allclose(jnp.sum(probs, axis=-1), 1.0, atol=1e-3)

    print("KERNEL_OK")
</pallas_src>

<mosaic_0001>
module attributes {stable_mosaic.version = 11 : i64} {
  func.func @actor_critic_kernel(%arg0: i32, %arg1: memref<8x16xbf16, #tpu.memory_space<vmem>>, %arg2: memref<16x128xbf16, #tpu.memory_space<vmem>>, %arg3: memref<1x128xf32, #tpu.memory_space<vmem>>, %arg4: memref<128x8xbf16, #tpu.memory_space<vmem>>, %arg5: memref<1x8xf32, #tpu.memory_space<vmem>>, %arg6: memref<8x8xf32, #tpu.memory_space<vmem>>) attributes {dimension_semantics = [#tpu.dimension_semantics<parallel>], iteration_bounds = array<i64: 2>, scalar_prefetch = 0 : i64, scratch_operands = 0 : i64, tpu.core_type = #tpu.core_type<tc>, window_params = [{transform_indices = @transform_0, window_bounds = array<i64: 8, 16>}, {pipeline_mode = #tpu.pipeline_mode<synchronous>, transform_indices = @transform_1, window_bounds = array<i64: 16, 128>}, {pipeline_mode = #tpu.pipeline_mode<synchronous>, transform_indices = @transform_2, window_bounds = array<i64: 1, 128>}, {pipeline_mode = #tpu.pipeline_mode<synchronous>, transform_indices = @transform_3, window_bounds = array<i64: 128, 8>}, {pipeline_mode = #tpu.pipeline_mode<synchronous>, transform_indices = @transform_4, window_bounds = array<i64: 1, 8>}, {transform_indices = @transform_5, window_bounds = array<i64: 8, 8>}]} {
    %c0 = arith.constant 0 : index
    %c0_0 = arith.constant 0 : index
    %0 = vector.load %arg1[%c0, %c0_0] : memref<8x16xbf16, #tpu.memory_space<vmem>>, vector<8x16xbf16>
    %c0_1 = arith.constant 0 : index
    %c0_2 = arith.constant 0 : index
    %1 = vector.load %arg2[%c0_1, %c0_2] : memref<16x128xbf16, #tpu.memory_space<vmem>>, vector<16x128xbf16>
    %cst = arith.constant dense<0.000000e+00> : vector<8x128xf32>
    %2 = tpu.matmul %0, %1, %cst {dimension_numbers = #tpu.dot_dimension_numbers<[1], [0], [0], [1], [0, 0, 1, 1], [], []>} : vector<8x16xbf16>, vector<16x128xbf16>, vector<8x128xf32> -> vector<8x128xf32>
    %c0_3 = arith.constant 0 : index
    %c0_4 = arith.constant 0 : index
    %3 = vector.load %arg3[%c0_3, %c0_4] : memref<1x128xf32, #tpu.memory_space<vmem>>, vector<1x128xf32>
    %4 = vector.broadcast %3 : vector<1x128xf32> to vector<8x128xf32>
    %5 = arith.addf %2, %4 : vector<8x128xf32>
    %cst_5 = arith.constant 0.000000e+00 : f32
    %6 = vector.broadcast %cst_5 : f32 to vector<8x128xf32>
    %7 = arith.maximumf %5, %6 : vector<8x128xf32>
    %8 = arith.truncf %7 : vector<8x128xf32> to vector<8x128xbf16>
    %c0_6 = arith.constant 0 : index
    %c0_7 = arith.constant 0 : index
    %9 = vector.load %arg4[%c0_6, %c0_7] : memref<128x8xbf16, #tpu.memory_space<vmem>>, vector<128x8xbf16>
    %cst_8 = arith.constant dense<0.000000e+00> : vector<8x8xf32>
    %10 = tpu.matmul %8, %9, %cst_8 {dimension_numbers = #tpu.dot_dimension_numbers<[1], [0], [0], [1], [0, 0, 1, 1], [], []>} : vector<8x128xbf16>, vector<128x8xbf16>, vector<8x8xf32> -> vector<8x8xf32>
    %c0_9 = arith.constant 0 : index
    %c0_10 = arith.constant 0 : index
    %11 = vector.load %arg5[%c0_9, %c0_10] : memref<1x8xf32, #tpu.memory_space<vmem>>, vector<1x8xf32>
    %12 = vector.broadcast %11 : vector<1x8xf32> to vector<8x8xf32>
    %13 = arith.addf %10, %12 : vector<8x8xf32>
    %14 = tpu.iota {dimensions = array<i32: 1>} : vector<8x8xi32>
    %c6_i32 = arith.constant 6 : i32
    %15 = vector.broadcast %c6_i32 : i32 to vector<8x8xi32>
    %16 = arith.cmpi slt, %14, %15 : vector<8x8xi32>
    %c6_i32_11 = arith.constant 6 : i32
    %17 = vector.broadcast %c6_i32_11 : i32 to vector<8x8xi32>
    %18 = arith.cmpi eq, %14, %17 : vector<8x8xi32>
    %cst_12 = arith.constant 0xFF800000 : f32
    %19 = vector.broadcast %cst_12 : f32 to vector<8x8xf32>
    %20 = arith.select %16, %13, %19 : vector<8x8xi1>, vector<8x8xf32>
    %cst_13 = arith.constant dense<0xFF800000> : vector<8xf32>
    %21 = vector.multi_reduction <maximumf>, %20, %cst_13 [1] : vector<8x8xf32> to vector<8xf32>
    %22 = vector.shape_cast %21 : vector<8xf32> to vector<8x1xf32>
    %23 = vector.broadcast %22 : vector<8x1xf32> to vector<8x8xf32>
    %24 = arith.subf %20, %23 : vector<8x8xf32>
    %25 = math.exp %24 : vector<8x8xf32>
    %cst_14 = arith.constant dense<0.000000e+00> : vector<8xf32>
    %26 = vector.multi_reduction <add>, %25, %cst_14 [1] : vector<8x8xf32> to vector<8xf32>
    %27 = vector.shape_cast %26 : vector<8xf32> to vector<8x1xf32>
    %28 = vector.broadcast %27 : vector<8x1xf32> to vector<8x8xf32>
    %29 = arith.divf %25, %28 : vector<8x8xf32>
    %30 = arith.select %18, %13, %29 : vector<8x8xi1>, vector<8x8xf32>
    %c0_15 = arith.constant 0 : index
    %c0_16 = arith.constant 0 : index
    %31 = vector.load %arg6[%c0_15, %c0_16] : memref<8x8xf32, #tpu.memory_space<vmem>>, vector<8x8xf32>
    tpu.vector_store %arg6[%c0_15, %c0_16], %30 {strides = array<i32>} : memref<8x8xf32, #tpu.memory_space<vmem>>, vector<8x8xf32>,
    return
  }
  func.func @transform_0(%arg0: i32) -> (i32, i32) {
    %c0_i32 = arith.constant 0 : i32
    %c0_i32_0 = arith.constant 0 : i32
    return %arg0, %c0_i32 : i32, i32
  }
  func.func @transform_1(%arg0: i32) -> (i32, i32) {
    %c0_i32 = arith.constant 0 : i32
    %c0_i32_0 = arith.constant 0 : i32
    %c0_i32_1 = arith.constant 0 : i32
    return %c0_i32, %c0_i32_0 : i32, i32
  }
  func.func @transform_2(%arg0: i32) -> (i32, i32) {
    %c0_i32 = arith.constant 0 : i32
    %c0_i32_0 = arith.constant 0 : i32
    %c0_i32_1 = arith.constant 0 : i32
    return %c0_i32, %c0_i32_0 : i32, i32
  }
  func.func @transform_3(%arg0: i32) -> (i32, i32) {
    %c0_i32 = arith.constant 0 : i32
    %c0_i32_0 = arith.constant 0 : i32
    %c0_i32_1 = arith.constant 0 : i32
    return %c0_i32, %c0_i32_0 : i32, i32
  }
  func.func @transform_4(%arg0: i32) -> (i32, i32) {
    %c0_i32 = arith.constant 0 : i32
    %c0_i32_0 = arith.constant 0 : i32
    %c0_i32_1 = arith.constant 0 : i32
    return %c0_i32, %c0_i32_0 : i32, i32
  }
  func.func @transform_5(%arg0: i32) -> (i32, i32) {
    %c0_i32 = arith.constant 0 : i32
    %c0_i32_0 = arith.constant 0 : i32
    return %arg0, %c0_i32 : i32, i32
  }
}

</mosaic_0001>

<llo_original>
// kernel: tpu_custom_call.1
$region0: #{tpu_custom_call.1}
  #allocation0 [shape = 'u32[]', space=smem, size = 0x4, offset = 0x4, fixed_abs, tag = 'smem constant byte address 0x4 - core index']
  #allocation1 [shape = 'u32[72,128]{1,0:T(1,128)}', space=vmem, size = 0x9000, scoped, tag = 'internal scratch']
  %s0 = inlined_call_operand.vmem [shape: bf16[16,16], index: 0, kind: input, shape index: {}]
  %s1 = inlined_call_operand.vmem [shape: bf16[16,128], index: 1, kind: input, shape index: {}]
  %s2 = inlined_call_operand.vmem [shape: f32[1,128], index: 2, kind: input, shape index: {}]
  %s3 = inlined_call_operand.vmem [shape: bf16[128,8], index: 3, kind: input, shape index: {}]
  %s4 = inlined_call_operand.vmem [shape: f32[1,8], index: 4, kind: input, shape index: {}]
  %s5 = inlined_call_operand.vmem [shape: f32[16,8], index: 5, kind: output, shape index: {}]
  %s6 = sld [smem:[#allocation0]]
  $region53: #{tpu_custom_call.1} parent=0
    _
  %s8 = ssub.s32 1, %s6
  %s9 = scalar_select 0, %s8, %s6
  loop: start=0, step=1, limit=4
  $region2: #{tpu_custom_call.1} parent=0 // loop_pre_header
    _
  $region3: #{tpu_custom_call.1} parent=0 // loop_header
    %s11 = sphi 0, %s15
    %p12 = scmp.ge.s32.totalorder %s11, 4
    %s21 = sphi 0, %s23
    %s24 = sphi 0, %s21
    %s25 = sphi 0, %s24
    %s41 = sphi 0, %s25
    %s45 = sphi 0, %s45
    %s47 = sphi 0, %s45
    %s48 = sphi 0, %s47
    %s62 = sphi 0, %s48
    %s66 = sphi 0, %s66
    %s68 = sphi 0, %s66
    %s69 = sphi 0, %s68
    %s83 = sphi 0, %s69
    %s87 = sphi 0, %s87
    %s89 = sphi 0, %s87
    %s90 = sphi 0, %s89
    %s104 = sphi 0, %s90
    %s108 = sphi 0, %s108
    %s110 = sphi 0, %s108
    %s111 = sphi 0, %s110
    %s125 = sphi 0, %s111
    %s131 = sphi 0, %s133
    %s134 = sphi 0, %s131
    %s135 = sphi 0, %s134
    %s151 = sphi 0, %s135
  $region4: #{tpu_custom_call.1} parent=0 // loop_header_branch
    %14 = sbr.rel (%p12) target = $region8
  $region5: #{tpu_custom_call.1} parent=0 // loop_body
    %s16 = ssub.s32 %s11, 1
    %s17 = ssub.s32 %s11, 2
    %s18 = sadd.s32 %s11, 1
    %s19 = ssub.s32 %s11, %s18
    %p20 = scmp.eq.s32.totalorder %s19, 0
    %s22 = sadd.s32 %s21, 1
    %s23 = scalar_select %p20, %s21, %s22
    %p26 = pneg %p20
    %p27 = scmp.eq.s32.totalorder %s11, 1
    %p28 = por %p26, %p27
    %p29 = scmp.ne.s32.totalorder %s21, %s24
    %p30 = scmp.eq.s32.totalorder %s11, 0
    %p31 = por %p29, %p30
    %p32 = scmp.ne.s32.totalorder %s21, %s24
    %p33 = scmp.eq.s32.totalorder %s16, 1
    %p34 = por %p32, %p33
    %p35 = scmp.ne.s32.totalorder %s24, %s25
    %p36 = scmp.eq.s32.totalorder %s16, 0
    %p37 = por %p35, %p36
    %p38 = scmp.ne.s32.totalorder %s24, %s25
    %p39 = scmp.eq.s32.totalorder %s17, 1
    %p40 = por %p38, %p39
    %p42 = scmp.ne.s32.totalorder %s25, %s41
    %p43 = scmp.eq.s32.totalorder %s17, 0
    %p44 = por %p42, %p43
    %s46 = sadd.s32 %s45, 1
    %p49 = scmp.eq.s32.totalorder %s11, 1
    %p50 = scmp.ne.s32.totalorder %s45, %s47
    %p51 = scmp.eq.s32.totalorder %s11, 0
    %p52 = por %p50, %p51
    %p53 = scmp.ne.s32.totalorder %s45, %s47
    %p54 = scmp.eq.s32.totalorder %s16, 1
    %p55 = por %p53, %p54
    %p56 = scmp.ne.s32.totalorder %s47, %s48
    %p57 = scmp.eq.s32.totalorder %s16, 0
    %p58 = por %p56, %p57
    %p59 = scmp.ne.s32.totalorder %s47, %s48
    %p60 = scmp.eq.s32.totalorder %s17, 1
    %p61 = por %p59, %p60
    %p63 = scmp.ne.s32.totalorder %s48, %s62
    %p64 = scmp.eq.s32.totalorder %s17, 0
    %p65 = por %p63, %p64
    %s67 = sadd.s32 %s66, 1
    %p70 = scmp.eq.s32.totalorder %s11, 1
    %p71 = scmp.ne.s32.totalorder %s66, %s68
    %p72 = scmp.eq.s32.totalorder %s11, 0
    %p73 = por %p71, %p72
    %p74 = scmp.ne.s32.totalorder %s66, %s68
    %p75 = scmp.eq.s32.totalorder %s16, 1
    %p76 = por %p74, %p75
    %p77 = scmp.ne.s32.totalorder %s68, %s69
    %p78 = scmp.eq.s32.totalorder %s16, 0
    %p79 = por %p77, %p78
    %p80 = scmp.ne.s32.totalorder %s68, %s69
    %p81 = scmp.eq.s32.totalorder %s17, 1
    %p82 = por %p80, %p81
    %p84 = scmp.ne.s32.totalorder %s69, %s83
    %p85 = scmp.eq.s32.totalorder %s17, 0
    %p86 = por %p84, %p85
    %s88 = sadd.s32 %s87, 1
    %p91 = scmp.eq.s32.totalorder %s11, 1
    %p92 = scmp.ne.s32.totalorder %s87, %s89
    %p93 = scmp.eq.s32.totalorder %s11, 0
    %p94 = por %p92, %p93
    %p95 = scmp.ne.s32.totalorder %s87, %s89
    %p96 = scmp.eq.s32.totalorder %s16, 1
    %p97 = por %p95, %p96
    %p98 = scmp.ne.s32.totalorder %s89, %s90
    %p99 = scmp.eq.s32.totalorder %s16, 0
    %p100 = por %p98, %p99
    %p101 = scmp.ne.s32.totalorder %s89, %s90
    %p102 = scmp.eq.s32.totalorder %s17, 1
    %p103 = por %p101, %p102
    %p105 = scmp.ne.s32.totalorder %s90, %s104
    %p106 = scmp.eq.s32.totalorder %s17, 0
    %p107 = por %p105, %p106
    %s109 = sadd.s32 %s108, 1
    %p112 = scmp.eq.s32.totalorder %s11, 1
    %p113 = scmp.ne.s32.totalorder %s108, %s110
    %p114 = scmp.eq.s32.totalorder %s11, 0
    %p115 = por %p113, %p114
    %p116 = scmp.ne.s32.totalorder %s108, %s110
    %p117 = scmp.eq.s32.totalorder %s16, 1
    %p118 = por %p116, %p117
    %p119 = scmp.ne.s32.totalorder %s110, %s111
    %p120 = scmp.eq.s32.totalorder %s16, 0
    %p121 = por %p119, %p120
    %p122 = scmp.ne.s32.totalorder %s110, %s111
    %p123 = scmp.eq.s32.totalorder %s17, 1
    %p124 = por %p122, %p123
    %p126 = scmp.ne.s32.totalorder %s111, %s125
    %p127 = scmp.eq.s32.totalorder %s17, 0
    %p128 = por %p126, %p127
    %s129 = ssub.s32 %s11, %s18
    %p130 = scmp.eq.s32.totalorder %s129, 0
    %s132 = sadd.s32 %s131, 1
    %s133 = scalar_select %p130, %s131, %s132
    %p136 = pneg %p130
    %p137 = scmp.eq.s32.totalorder %s11, 1
    %p138 = por %p136, %p137
    %p139 = scmp.ne.s32.totalorder %s131, %s134
    %p140 = scmp.eq.s32.totalorder %s11, 0
    %p141 = por %p139, %p140
    %p142 = scmp.ne.s32.totalorder %s131, %s134
    %p143 = scmp.eq.s32.totalorder %s16, 1
    %p144 = por %p142, %p143
    %p145 = scmp.ne.s32.totalorder %s134, %s135
    %p146 = scmp.eq.s32.totalorder %s16, 0
    %p147 = por %p145, %p146
    %p148 = scmp.ne.s32.totalorder %s134, %s135
    %p149 = scmp.eq.s32.totalorder %s17, 1
    %p150 = por %p148, %p149
    %p152 = scmp.ne.s32.totalorder %s135, %s151
    %p153 = scmp.eq.s32.totalorder %s17, 0
    %p154 = por %p152, %p153
    %p155 = scmp.le.s32.totalorder 1, %s11
    %p156 = scmp.lt.s32.totalorder %s11, 3
    %p157 = pnand %p155, %p156
    %p158 = pneg %p157
    // Predicated region
    $region9: #{tpu_custom_call.1} parent=5 // pred_check
      _
    $region10: #{tpu_custom_call.1} parent=5 // pred_check_branch
      %160 = sbr.rel (%p157) target = $region12
    $region11: #{tpu_custom_call.1} parent=5 // pred_region
      %s161 = ssub.s32 %s11, 1
      // Predicated region
      $region13: #{tpu_custom_call.1} parent=11 // pred_check
        %p162 = pneg %p58
      $region14: #{tpu_custom_call.1} parent=11 // pred_check_branch
        %164 = sbr.rel (%p162) target = $region16
      $region15: #{tpu_custom_call.1} parent=11 // pred_region
        _
      $region16: #{tpu_custom_call.1} parent=11 // pred_fallthru
        _
      // Predicated region
      $region17: #{tpu_custom_call.1} parent=11 // pred_check
        %p165 = pneg %p79
      $region18: #{tpu_custom_call.1} parent=11 // pred_check_branch
        %167 = sbr.rel (%p165) target = $region20
      $region19: #{tpu_custom_call.1} parent=11 // pred_region
        _
      $region20: #{tpu_custom_call.1} parent=11 // pred_fallthru
        _
      // Predicated region
      $region21: #{tpu_custom_call.1} parent=11 // pred_check
        %p168 = pneg %p100
      $region22: #{tpu_custom_call.1} parent=11 // pred_check_branch
        %170 = sbr.rel (%p168) target = $region24
      $region23: #{tpu_custom_call.1} parent=11 // pred_region
        _
      $region24: #{tpu_custom_call.1} parent=11 // pred_fallthru
        _
      // Predicated region
      $region25: #{tpu_custom_call.1} parent=11 // pred_check
        %p171 = pneg %p121
      $region26: #{tpu_custom_call.1} parent=11 // pred_check_branch
        %173 = sbr.rel (%p171) target = $region28
      $region27: #{tpu_custom_call.1} parent=11 // pred_region
        _
      $region28: #{tpu_custom_call.1} parent=11 // pred_fallthru
        _
    $region12: #{tpu_custom_call.1} parent=5 // pred_fallthru
      _
    %p174 = scmp.lt.s32.totalorder %s11, 2
    // Predicated region
    $region29: #{tpu_custom_call.1} parent=5 // pred_check
      %p175 = pneg %p174
    $region30: #{tpu_custom_call.1} parent=5 // pred_check_branch
      %177 = sbr.rel (%p175) target = $region32
    $region31: #{tpu_custom_call.1} parent=5 // pred_region
      // Predicated region
      $region33: #{tpu_custom_call.1} parent=31 // pred_check
        %p178 = pneg %p31
      $region34: #{tpu_custom_call.1} parent=31 // pred_check_branch
        %180 = sbr.rel (%p178) target = $region36
      $region35: #{tpu_custom_call.1} parent=31 // pred_region
        %p181 = scmp.lt.s32.totalorder %s11, 1
        %s182 = scalar_select %p181, %s11, 1
        %s183 = smul.addr %s182, 4
        %s184 = scalar_lea.vmem %s0, %s183
      $region36: #{tpu_custom_call.1} parent=31 // pred_fallthru
        _
    $region32: #{tpu_custom_call.1} parent=5 // pred_fallthru
      _
    %p185 = scmp.le.s32.totalorder 1, %s11
    %p186 = scmp.lt.s32.totalorder %s11, 3
    %p187 = pnand %p185, %p186
    %p188 = pneg %p187
    // Predicated region
    $region37: #{tpu_custom_call.1} parent=5 // pred_check
      _
    $region38: #{tpu_custom_call.1} parent=5 // pred_check_branch
      %190 = sbr.rel (%p187) target = $region40
    $region39: #{tpu_custom_call.1} parent=5 // pred_region
      %s191 = ssub.s32 %s11, 1
      %p192 = scmp.lt.s32.totalorder %s16, 1
      %s193 = scalar_select %p192, %s16, 1
      %s194 = smul.addr %s193, 4
      %s195 = scalar_lea.vmem %s0, %s194
      %p196 = pneg %p37
      %p197 = pneg %p34
      %p198 = pneg %p58
      %p199 = pneg %p55
      %p200 = pneg %p79
      %p201 = pneg %p76
      %p202 = pneg %p100
      %p203 = pneg %p97
      %p204 = pneg %p121
      %p205 = pneg %p118
      %p206 = pneg %p147
      %p207 = pneg %p144
      %p208 = scmp.lt.s32.totalorder %s16, 1
      %s209 = scalar_select %p208, %s16, 1
      %s210 = smul.addr %s209, 8
      %s211 = scalar_lea.vmem %s5, %s210
      %p212 = scmp.lt.s32.totalorder %s16, 1
      %s213 = scalar_select %p212, %s16, 1
      %s214 = smul.addr %s213, 4
      %s215 = scalar_lea.vmem %s0, %s214
      %p216 = scmp.lt.s32.totalorder %s16, 1
      %s217 = scalar_select %p216, %s16, 1
      %s218 = smul.addr %s217, 8
      %s219 = scalar_lea.vmem %s5, %s218
      %v221 = vld [vmem:[%s215] sm:$0xf]
      %v222 = vld [vmem:[%s1] sm:$0xf]
      %v223 = vld [vmem:[%s1 + $0x4] sm:$0xf]
      %v224 = vld [vmem:[%s2] sm:$0x1]
      %v226 = vperm.slane %v224, 0
      %v230 = vunpack.c.l.b16 %v222
      %v231 = vunpack.c.l.b16 %v223
      %v232 = vpack.c.b16 %v231, %v230
      %vm234 = vcmask 130048
      %v236 = vsel %vm234, %v221, 0
      %238 = vmatpush.bf16.msra.mxu0 0
      %239 = vmatpush.bf16.msra.mxu0 0
      %240 = vmatpush.bf16.msra.mxu0 0
      %241 = vmatpush.bf16.msra.mxu0 0
      %242 = vmatpush.bf16.msra.mxu0 0
      %243 = vmatpush.bf16.msra.mxu0 0
      %244 = vmatpush.bf16.msra.mxu0 0
      %245 = vmatpush.bf16.msra.mxu0 %v232
      %246 = vmatmul.bf16.gmra.mxu0 %v236
      %v247 = vpop.f32.mrf.mxu0
      %v248 = vadd.f32 %v226, %v247
      %v249 = vpop.f32.mrf.mxu0
      %250 = vdwg.mxu0
      %v251 = vmax.f32 %v248, 0.0
      %v252 = vpack.c.bf16 %v251, %v251
      %v253 = vld [vmem:[%s3] sm:$0xf]
      %v254 = vld [vmem:[%s3 + $0x4] sm:$0xf]
      %v255 = vld [vmem:[%s3 + $0x8] sm:$0xf]
      %v256 = vld [vmem:[%s3 + $0xc] sm:$0xf]
      %v257 = vld [vmem:[%s3 + $0x10] sm:$0xf]
      %v258 = vld [vmem:[%s3 + $0x14] sm:$0xf]
      %v259 = vld [vmem:[%s3 + $0x18] sm:$0xf]
      %v260 = vld [vmem:[%s3 + $0x1c] sm:$0xf]
      %v261 = vld [vmem:[%s3 + $0x20] sm:$0xf]
      %v262 = vld [vmem:[%s3 + $0x24] sm:$0xf]
      %v263 = vld [vmem:[%s3 + $0x28] sm:$0xf]
      %v264 = vld [vmem:[%s3 + $0x2c] sm:$0xf]
      %v265 = vld [vmem:[%s3 + $0x30] sm:$0xf]
      %v266 = vld [vmem:[%s3 + $0x34] sm:$0xf]
      %v267 = vld [vmem:[%s3 + $0x38] sm:$0xf]
      %v268 = vld [vmem:[%s3 + $0x3c] sm:$0xf]
      %v269 = vld [vmem:[%s4] sm:$0x1]
      %v271 = vperm.slane %v269, 0
      %v289 = vunpack.c.l.b16 %v253
      %v290 = vunpack.c.l.b16 %v254
      %v291 = vunpack.c.l.b16 %v255
      %v292 = vunpack.c.l.b16 %v256
      %v293 = vunpack.c.l.b16 %v257
      %v294 = vunpack.c.l.b16 %v258
      %v295 = vunpack.c.l.b16 %v259
      %v296 = vunpack.c.l.b16 %v260
      %v297 = vunpack.c.l.b16 %v261
      %v298 = vunpack.c.l.b16 %v262
      %v299 = vunpack.c.l.b16 %v263
      %v300 = vunpack.c.l.b16 %v264
      %v301 = vunpack.c.l.b16 %v265
      %v302 = vunpack.c.l.b16 %v266
      %v303 = vunpack.c.l.b16 %v267
      %v304 = vunpack.c.l.b16 %v268
      %v305 = vpack.c.b16 %v290, %v289
      %v306 = vpack.c.b16 %v292, %v291
      %v307 = vpack.c.b16 %v294, %v293
      %v308 = vpack.c.b16 %v296, %v295
      %v309 = vpack.c.b16 %v298, %v297
      %v310 = vpack.c.b16 %v300, %v299
      %v311 = vpack.c.b16 %v302, %v301
      %v312 = vpack.c.b16 %v304, %v303
      %321 = vmatpush.bf16.msra.mxu0 %v312
      %322 = vmatpush.bf16.msra.mxu0 %v311
      %323 = vmatpush.bf16.msra.mxu0 %v310
      %324 = vmatpush.bf16.msra.mxu0 %v309
      %325 = vmatpush.bf16.msra.mxu0 %v308
      %326 = vmatpush.bf16.msra.mxu0 %v307
      %327 = vmatpush.bf16.msra.mxu0 %v306
      %328 = vmatpush.bf16.msra.mxu0 %v305
      %329 = vmatmul.bf16.gmra.mxu0 %v252
      %v330 = vpop.f32.mrf.mxu0
      %v331 = vadd.f32 %v271, %v330
      %v332 = vpop.f32.mrf.mxu0
      %333 = vdwg.mxu0
      %v334 = vlaneseq
      %v335 = vand.u32 %v334, 127
      %vm336 = vcmp.lt.s32.totalorder %v335, 6
      %vm337 = vcmp.eq.s32.totalorder %v335, 6
      %v338 = vsel %vm336, %v331, -inf
      %vm339 = vcmask 64512
      %v340 = vsel %vm339, %v338, -inf
      %341 = vmax.xlane.f32.xlu0 %v340
      %v342 = vpop.xlane.xlu0 %341
      %v343 = vsub.f32 %v338, %v342
      %v344 = vmul.f32 %v343, 1.442695
      %v345 = vpow.pop %v344
      %v346 = vsel %vm339, %v345, 0.0
      %347 = vadd.xlane.f32.xlu0 %v346
      %v348 = vpop.xlane.xlu0 %347
      %v349 = vrcp.pop %v348
      %v350 = vmul.f32 %v348, %v349
      %v351 = vsub.f32 1.0, %v350
      %v352 = vmul.f32 %v349, %v351
      %v353 = vadd.f32 %v349, %v352
      %vm354 = vweird.f32 %v348
      %vm355 = vweird.f32 %v349
      %vm356 = vmor %vm354, %vm355
      %v357 = vsel %vm356, %v349, %v353
      %v358 = vand.u32 2147483647, %v348
      %vm359 = vcmp.eq.f32.partialorder %v358, 8.507059e+37
      %v360 = vand.u32 %v348, 2147483648
      %v361 = vor.u32 1.1754944e-38, %v360
      %v362 = vsel %vm359, %v361, %v357
      %v363 = vmul.f32 %v345, %v362
      %v364 = vsel %vm337, %v331, %v363
      %365 = vst.msk [vmem:[%s219] sm:$0xff] %vm339, %v364
      %p366 = scmp.lt.s32.totalorder %s16, 1
      %s367 = scalar_select %p366, %s16, 1
      %s368 = smul.addr %s367, 8
      %s369 = scalar_lea.vmem %s5, %s368
      // Predicated region
      $region41: #{tpu_custom_call.1} parent=39 // pred_check
        %p370 = pneg %p144
      $region42: #{tpu_custom_call.1} parent=39 // pred_check_branch
        %372 = sbr.rel (%p370) target = $region44
      $region43: #{tpu_custom_call.1} parent=39 // pred_region
        _
      $region44: #{tpu_custom_call.1} parent=39 // pred_fallthru
        _
    $region40: #{tpu_custom_call.1} parent=5 // pred_fallthru
      _
    %p373 = scmp.le.s32.totalorder 2, %s11
    // Predicated region
    $region45: #{tpu_custom_call.1} parent=5 // pred_check
      %p374 = pneg %p373
    $region46: #{tpu_custom_call.1} parent=5 // pred_check_branch
      %376 = sbr.rel (%p374) target = $region48
    $region47: #{tpu_custom_call.1} parent=5 // pred_region
      %s377 = ssub.s32 %s11, 2
      // Predicated region
      $region49: #{tpu_custom_call.1} parent=47 // pred_check
        %p378 = pneg %p150
      $region50: #{tpu_custom_call.1} parent=47 // pred_check_branch
        %380 = sbr.rel (%p378) target = $region52
      $region51: #{tpu_custom_call.1} parent=47 // pred_region
        %p381 = scmp.lt.s32.totalorder %s17, 1
        %s382 = scalar_select %p381, %s17, 1
        %s383 = smul.addr %s382, 8
        %s384 = scalar_lea.vmem %s5, %s383
      $region52: #{tpu_custom_call.1} parent=47 // pred_fallthru
        _
    $region48: #{tpu_custom_call.1} parent=5 // pred_fallthru
      _
  $region6: #{tpu_custom_call.1} parent=0 // loop_footer
    %s15 = sadd.s32 1, %s11
  $region7: #{tpu_custom_call.1} parent=0 // loop_footer_branch
    %10 = sbr.rel target = $region3
  $region8: #{tpu_custom_call.1} parent=0 // loop_exit
    _

</llo_original>
